<compile_context>
chip_gen: v7x
topology: tpu7x:2x2x1
jax: 0.10.0
libtpu: 0.0.40
codegen_flags: <defaults>
</compile_context>

<pallas_src>
from functools import partial

import jax
import jax.numpy as jnp
from jax.experimental import pallas as pl
from jax.experimental.pallas import tpu as pltpu


def _round_up(x, m):
    return (x + m - 1) // m * m


# ---------------------------------------------------------------------------
# Pass 1: tiled GEMM, emitting only per-tile per-channel BN partial sums.
# ---------------------------------------------------------------------------
def _stats_kernel(x_ref, w_ref, sum_ref, ssq_ref):
    # x_ref:   (tile_rows, K_p)   im2col rows for this tile
    # w_ref:   (K_p, Cout_p)      conv weight as GEMM RHS (lane-dense)
    # sum_ref: (1, Cout_p)        per-tile per-channel sum of y
    # ssq_ref: (1, Cout_p)        per-tile per-channel sum of y^2
    y = jnp.dot(x_ref[...], w_ref[...], preferred_element_type=jnp.float32)
    sum_ref[...] = jnp.sum(y, axis=0, keepdims=True)
    ssq_ref[...] = jnp.sum(y * y, axis=0, keepdims=True)


# ---------------------------------------------------------------------------
# Pass 2: fused conv (GEMM with BN-scale folded into the weights) + shift
#         + leaky_relu(0.01).
# ---------------------------------------------------------------------------
def _fused_conv_bn_act_kernel(x_ref, w_ref, shift_ref, o_ref, *, slope):
    # x_ref:     (tile_rows, K_p)
    # w_ref:     (K_p, Cout_p)   weights pre-multiplied by per-channel BN scale
    # shift_ref: (1, Cout_p)     beta - mean * scale
    # o_ref:     (tile_rows, Cout_p)
    z = jnp.dot(x_ref[...], w_ref[...], preferred_element_type=jnp.float32)
    z = z + shift_ref[...]
    o_ref[...] = jnp.where(z >= 0, z, slope * z).astype(o_ref.dtype)


def _pick_tile_rows(M, bytes_per_row, budget_bytes=4 * 1024 * 1024):
    """Largest power-of-two row tile that divides M and fits the VMEM budget."""
    for t in (4096, 2048, 1024, 512, 256, 128, 64, 32, 16, 8):
        if t <= M and M % t == 0 and t * bytes_per_row <= budget_bytes:
            return t
    return M  # tiny / odd M: a single full block (full dims are always legal)


def conv_bn_relu(x_nchw, weight_oihw, gamma, beta, *, stride=1, pad=1,
                 eps=1e-5, slope=0.01, tile_rows=None,
                 compute_dtype=jnp.float32):
    N, Cin, H, W = x_nchw.shape
    Cout, Cin_w, KH, KW = weight_oihw.shape
    assert Cin_w == Cin

    Ho = (H + 2 * pad - KH) // stride + 1
    Wo = (W + 2 * pad - KW) // stride + 1

    K = KH * KW * Cin
    K_p = _round_up(K, 8)            # sublane-friendly GEMM contraction dim
    Cout_p = _round_up(Cout, 128)    # lane-dense output channels
    M = N * Ho * Wo

    # ---- JAX glue (layout only): NCHW->NHWC, spatial pad, im2col, flatten ----
    x = jnp.transpose(x_nchw, (0, 2, 3, 1))
    x_pad = jnp.pad(x, ((0, 0), (pad, pad), (pad, pad), (0, 0)))
    patches = []
    for kh in range(KH):
        for kw in range(KW):
            patches.append(
                x_pad[:, kh:kh + (Ho - 1) * stride + 1:stride,
                         kw:kw + (Wo - 1) * stride + 1:stride, :])
    x_col = jnp.concatenate(patches, axis=-1).reshape(M, K)       # (M, K)
    x_col = jnp.pad(x_col, ((0, 0), (0, K_p - K))).astype(compute_dtype)

    # OIHW -> (KH,KW,Cin,Cout) -> (K,Cout), matching the im2col ordering above.
    w_f32 = jnp.transpose(weight_oihw, (2, 3, 1, 0)).reshape(K, Cout)
    w_f32 = jnp.pad(w_f32, ((0, K_p - K), (0, Cout_p - Cout))).astype(jnp.float32)
    w_mat = w_f32.astype(compute_dtype)

    if tile_rows is None:
        tile_rows = _pick_tile_rows(M, bytes_per_row=4 * (K_p + Cout_p))
    assert M % tile_rows == 0, "tile_rows must divide N*Ho*Wo"
    G = M // tile_rows

    cparams = pltpu.CompilerParams(
        dimension_semantics=("parallel",),       # shard row tiles across TCs
        vmem_limit_bytes=32 * 1024 * 1024)       # explicit scoped-VMEM headroom

    # ---- Pass 1: GEMM + per-tile BN partial sums (tiny HBM outputs) ----------
    psum, pssq = pl.pallas_call(
        _stats_kernel,
        grid=(G,),
        in_specs=[
            pl.BlockSpec((tile_rows, K_p), lambda i: (i, 0)),
            pl.BlockSpec((K_p, Cout_p), lambda i: (0, 0)),
        ],
        out_specs=(
            pl.BlockSpec((None, 1, Cout_p), lambda i: (i, 0, 0)),
            pl.BlockSpec((None, 1, Cout_p), lambda i: (i, 0, 0)),
        ),
        out_shape=(
            jax.ShapeDtypeStruct((G, 1, Cout_p), jnp.float32),
            jax.ShapeDtypeStruct((G, 1, Cout_p), jnp.float32),
        ),
        compiler_params=cparams,
    )(x_col, w_mat)

    # ---- glue: global batch stats; fold mean/var/|gamma|+eps/beta ------------
    count = jnp.float32(M)
    mean = jnp.sum(psum, axis=(0, 1)) / count                      # (Cout_p,)
    var = jnp.maximum(jnp.sum(pssq, axis=(0, 1)) / count - mean * mean, 0.0)
    inv_std = jax.lax.rsqrt(var + eps)
    g = jnp.pad(jnp.abs(gamma) + eps, (0, Cout_p - Cout))          # |gamma|+eps
    b = jnp.pad(beta, (0, Cout_p - Cout))
    scale = (g * inv_std).astype(jnp.float32)                      # (Cout_p,)
    shift = (b - mean * scale).reshape(1, Cout_p).astype(jnp.float32)
    # Conv is linear in the weights: fold the per-channel BN scale into them.
    w_scaled = (w_f32 * scale[None, :]).astype(compute_dtype)      # (K_p, Cout_p)

    # ---- Pass 2: fused conv + BN affine + leaky_relu --------------------------
    out_flat = pl.pallas_call(
        partial(_fused_conv_bn_act_kernel, slope=slope),
        grid=(G,),
        in_specs=[
            pl.BlockSpec((tile_rows, K_p), lambda i: (i, 0)),
            pl.BlockSpec((K_p, Cout_p), lambda i: (0, 0)),
            pl.BlockSpec((1, Cout_p), lambda i: (0, 0)),
        ],
        out_specs=pl.BlockSpec((tile_rows, Cout_p), lambda i: (i, 0)),
        out_shape=jax.ShapeDtypeStruct((M, Cout_p), jnp.float32),
        compiler_params=cparams,
    )(x_col, w_scaled, shift)

    out = out_flat.reshape(N, Ho, Wo, Cout_p)[..., :Cout]
    return jnp.transpose(out, (0, 3, 1, 2))                        # back to NCHW


def _reference(x_nchw, weight_oihw, gamma, beta, *, stride=1, pad=1,
               eps=1e-5, slope=0.01):
    """Pure-JAX reference (same math, lax.conv) for correctness check."""
    y = jax.lax.conv_general_dilated(
        x_nchw.astype(jnp.float32), weight_oihw.astype(jnp.float32),
        window_strides=(stride, stride), padding=[(pad, pad), (pad, pad)],
        dimension_numbers=("NCHW", "OIHW", "NCHW"))
    mean = jnp.mean(y, axis=(0, 2, 3), keepdims=True)
    var = jnp.mean((y - mean) ** 2, axis=(0, 2, 3), keepdims=True)
    x_hat = (y - mean) / jnp.sqrt(var + eps)
    g = (jnp.abs(gamma) + eps).reshape(1, -1, 1, 1)
    b = beta.reshape(1, -1, 1, 1)
    z = x_hat * g + b
    return jnp.where(z >= 0, z, slope * z)


if __name__ == "__main__":
    key = jax.random.PRNGKey(0)
    k_x, k_w, k_g, k_b = jax.random.split(key, 4)

    N, Cin, H, W = 2, 4, 16, 16
    Cout, KH, KW = 8, 3, 3

    x = jax.random.normal(k_x, (N, Cin, H, W), dtype=jnp.float32)
    weight = jax.random.normal(k_w, (Cout, Cin, KH, KW), dtype=jnp.float32) * 0.1
    gamma = 1.0 + 0.1 * jax.random.normal(k_g, (Cout,), dtype=jnp.float32)
    beta = 0.1 * jax.random.normal(k_b, (Cout,), dtype=jnp.float32)

    # tile_rows=128 -> 4 grid steps, exercising the multi-tile stats reduction.
    out = conv_bn_relu(x, weight, gamma, beta, tile_rows=128)
    out = jax.block_until_ready(out)

    ref = _reference(x, weight, gamma, beta)
    assert out.shape == (N, Cout, H, W)
    assert jnp.allclose(out, ref, rtol=1e-4, atol=1e-4), "mismatch vs reference"

    print("KERNEL_OK")
</pallas_src>

<mosaic_0001>
module attributes {stable_mosaic.version = 11 : i64} {
  func.func @_stats_kernel(%arg0: i32, %arg1: memref<128x40xf32, #tpu.memory_space<vmem>>, %arg2: memref<40x128xf32, #tpu.memory_space<vmem>>, %arg3: memref<1x1x128xf32, #tpu.memory_space<vmem>>, %arg4: memref<1x1x128xf32, #tpu.memory_space<vmem>>) attributes {dimension_semantics = [#tpu.dimension_semantics<parallel>], iteration_bounds = array<i64: 4>, scalar_prefetch = 0 : i64, scratch_operands = 0 : i64, tpu.core_type = #tpu.core_type<tc>, window_params = [{transform_indices = @transform_0, window_bounds = array<i64: 128, 40>}, {pipeline_mode = #tpu.pipeline_mode<synchronous>, transform_indices = @transform_1, window_bounds = array<i64: 40, 128>}, {transform_indices = @transform_2, window_bounds = array<i64: 1, 1, 128>}, {transform_indices = @transform_3, window_bounds = array<i64: 1, 1, 128>}]} {
    %c0 = arith.constant 0 : index
    %c0_0 = arith.constant 0 : index
    %0 = vector.load %arg1[%c0, %c0_0] : memref<128x40xf32, #tpu.memory_space<vmem>>, vector<128x40xf32>
    %c0_1 = arith.constant 0 : index
    %c0_2 = arith.constant 0 : index
    %1 = vector.load %arg2[%c0_1, %c0_2] : memref<40x128xf32, #tpu.memory_space<vmem>>, vector<40x128xf32>
    %cst = arith.constant dense<0.000000e+00> : vector<128x128xf32>
    %2 = tpu.matmul %0, %1, %cst {dimension_numbers = #tpu.dot_dimension_numbers<[1], [0], [0], [1], [0, 0, 1, 1], [], []>} : vector<128x40xf32>, vector<40x128xf32>, vector<128x128xf32> -> vector<128x128xf32>
    %cst_3 = arith.constant dense<0.000000e+00> : vector<128xf32>
    %3 = vector.multi_reduction <add>, %2, %cst_3 [0] : vector<128x128xf32> to vector<128xf32>
    %4 = vector.shape_cast %3 : vector<128xf32> to vector<1x128xf32>
    %c0_4 = arith.constant 0 : index
    %c0_5 = arith.constant 0 : index
    %c0_6 = arith.constant 0 : index
    %5 = vector.load %arg3[%c0_4, %c0_5, %c0_6] : memref<1x1x128xf32, #tpu.memory_space<vmem>>, vector<1x1x128xf32>
    %6 = vector.shape_cast %5 : vector<1x1x128xf32> to vector<1x128xf32>
    %7 = vector.shape_cast %4 : vector<1x128xf32> to vector<1x1x128xf32>
    tpu.vector_store %arg3[%c0_4, %c0_5, %c0_6], %7 {strides = array<i32>} : memref<1x1x128xf32, #tpu.memory_space<vmem>>, vector<1x1x128xf32>,
    %8 = arith.mulf %2, %2 : vector<128x128xf32>
    %cst_7 = arith.constant dense<0.000000e+00> : vector<128xf32>
    %9 = vector.multi_reduction <add>, %8, %cst_7 [0] : vector<128x128xf32> to vector<128xf32>
    %10 = vector.shape_cast %9 : vector<128xf32> to vector<1x128xf32>
    %c0_8 = arith.constant 0 : index
    %c0_9 = arith.constant 0 : index
    %c0_10 = arith.constant 0 : index
    %11 = vector.load %arg4[%c0_8, %c0_9, %c0_10] : memref<1x1x128xf32, #tpu.memory_space<vmem>>, vector<1x1x128xf32>
    %12 = vector.shape_cast %11 : vector<1x1x128xf32> to vector<1x128xf32>
    %13 = vector.shape_cast %10 : vector<1x128xf32> to vector<1x1x128xf32>
    tpu.vector_store %arg4[%c0_8, %c0_9, %c0_10], %13 {strides = array<i32>} : memref<1x1x128xf32, #tpu.memory_space<vmem>>, vector<1x1x128xf32>,
    return
  }
  func.func @transform_0(%arg0: i32) -> (i32, i32) {
    %c0_i32 = arith.constant 0 : i32
    %c0_i32_0 = arith.constant 0 : i32
    return %arg0, %c0_i32 : i32, i32
  }
  func.func @transform_1(%arg0: i32) -> (i32, i32) {
    %c0_i32 = arith.constant 0 : i32
    %c0_i32_0 = arith.constant 0 : i32
    %c0_i32_1 = arith.constant 0 : i32
    return %c0_i32, %c0_i32_0 : i32, i32
  }
  func.func @transform_2(%arg0: i32) -> (i32, i32, i32) {
    %c0_i32 = arith.constant 0 : i32
    %c0_i32_0 = arith.constant 0 : i32
    %c0_i32_1 = arith.constant 0 : i32
    return %arg0, %c0_i32, %c0_i32_0 : i32, i32, i32
  }
  func.func @transform_3(%arg0: i32) -> (i32, i32, i32) {
    %c0_i32 = arith.constant 0 : i32
    %c0_i32_0 = arith.constant 0 : i32
    %c0_i32_1 = arith.constant 0 : i32
    return %arg0, %c0_i32, %c0_i32_0 : i32, i32, i32
  }
}

</mosaic_0001>

<llo_original>
// kernel: tpu_custom_call.1
$region0: #{tpu_custom_call.1}
  #allocation0 [shape = 'u32[]', space=smem, size = 0x4, offset = 0x4, fixed_abs, tag = 'smem constant byte address 0x4 - core index']
  #allocation1 [shape = 'u32[144,128]{1,0:T(1,128)}', space=vmem, size = 0x12000, scoped, tag = 'internal scratch']
  %s0 = inlined_call_operand.vmem [shape: f32[512,40], index: 0, kind: input, shape index: {}]
  %s1 = inlined_call_operand.vmem [shape: f32[40,128], index: 1, kind: input, shape index: {}]
  %s2 = inlined_call_operand.hbm [shape: f32[4,1,128], index: 2, kind: output, shape index: {0}]
  %s3 = inlined_call_operand.hbm [shape: f32[4,1,128], index: 3, kind: output, shape index: {1}]
  %4 = xla_tuple %s2, %s3
  %s5 = sld [smem:[#allocation0]]
  $region49: #{tpu_custom_call.1} parent=0
    _
  %s7 = ssub.s32 1, %s5
  %s8 = scalar_select 0, %s7, %s5
  $region1: #{tpu_custom_call.1} parent=0
    #allocation2 [shape = 'u8[1024]{0}', space=vmem, size = 0x400, scoped, tag = 'output window, operand 0']
    #allocation3 [shape = 's32[2]{0}', space=sflag, size = 0x8, scoped, tag = 'scoped memory for tpu_custom_call.1']
    #allocation4 [shape = 'u8[1024]{0}', space=vmem, size = 0x400, scoped, tag = 'output window, operand 1']
    #allocation5 [shape = 's32[2]{0}', space=sflag, size = 0x8, scoped, tag = 'scoped memory for tpu_custom_call.1']
    %9 = vsyncpa [#allocation3], 0
    %s10 = scalar_lea.sflag [#allocation3], 1
    %11 = vsyncpa %s10, 0
    %12 = vsyncpa [#allocation5], 0
    %s13 = scalar_lea.sflag [#allocation5], 1
    %14 = vsyncpa %s13, 0
    loop: start=0, step=1, limit=6
    $region2: #{tpu_custom_call.1} parent=1 // loop_pre_header
      _
    $region3: #{tpu_custom_call.1} parent=1 // loop_header
      %s16 = sphi 0, %s20
      %p17 = scmp.ge.s32.totalorder %s16, 6
      %s26 = sphi 0, %s28
      %s29 = sphi 0, %s26
      %s30 = sphi 0, %s29
      %s46 = sphi 0, %s30
      %s50 = sphi 0, %s50
      %s52 = sphi 0, %s50
      %s53 = sphi 0, %s52
      %s67 = sphi 0, %s53
      %s73 = sphi 0, %s75
      %s76 = sphi 0, %s73
      %s77 = sphi 0, %s76
      %s93 = sphi 0, %s77
      %s99 = sphi 0, %s101
      %s102 = sphi 0, %s99
      %s103 = sphi 0, %s102
      %s119 = sphi 0, %s103
    $region4: #{tpu_custom_call.1} parent=1 // loop_header_branch
      %19 = sbr.rel (%p17) target = $region8
    $region5: #{tpu_custom_call.1} parent=1 // loop_body
      %s21 = ssub.s32 %s16, 1
      %s22 = ssub.s32 %s16, 2
      %s23 = sadd.s32 %s16, 1
      %s24 = ssub.s32 %s16, %s23
      %p25 = scmp.eq.s32.totalorder %s24, 0
      %s27 = sadd.s32 %s26, 1
      %s28 = scalar_select %p25, %s26, %s27
      %p31 = pneg %p25
      %p32 = scmp.eq.s32.totalorder %s16, 3
      %p33 = por %p31, %p32
      %p34 = scmp.ne.s32.totalorder %s26, %s29
      %p35 = scmp.eq.s32.totalorder %s16, 0
      %p36 = por %p34, %p35
      %p37 = scmp.ne.s32.totalorder %s26, %s29
      %p38 = scmp.eq.s32.totalorder %s21, 3
      %p39 = por %p37, %p38
      %p40 = scmp.ne.s32.totalorder %s29, %s30
      %p41 = scmp.eq.s32.totalorder %s21, 0
      %p42 = por %p40, %p41
      %p43 = scmp.ne.s32.totalorder %s29, %s30
      %p44 = scmp.eq.s32.totalorder %s22, 3
      %p45 = por %p43, %p44
      %p47 = scmp.ne.s32.totalorder %s30, %s46
      %p48 = scmp.eq.s32.totalorder %s22, 0
      %p49 = por %p47, %p48
      %s51 = sadd.s32 %s50, 1
      %p54 = scmp.eq.s32.totalorder %s16, 3
      %p55 = scmp.ne.s32.totalorder %s50, %s52
      %p56 = scmp.eq.s32.totalorder %s16, 0
      %p57 = por %p55, %p56
      %p58 = scmp.ne.s32.totalorder %s50, %s52
      %p59 = scmp.eq.s32.totalorder %s21, 3
      %p60 = por %p58, %p59
      %p61 = scmp.ne.s32.totalorder %s52, %s53
      %p62 = scmp.eq.s32.totalorder %s21, 0
      %p63 = por %p61, %p62
      %p64 = scmp.ne.s32.totalorder %s52, %s53
      %p65 = scmp.eq.s32.totalorder %s22, 3
      %p66 = por %p64, %p65
      %p68 = scmp.ne.s32.totalorder %s53, %s67
      %p69 = scmp.eq.s32.totalorder %s22, 0
      %p70 = por %p68, %p69
      %s71 = ssub.s32 %s16, %s23
      %p72 = scmp.eq.s32.totalorder %s71, 0
      %s74 = sadd.s32 %s73, 1
      %s75 = scalar_select %p72, %s73, %s74
      %p78 = pneg %p72
      %p79 = scmp.eq.s32.totalorder %s16, 3
      %p80 = por %p78, %p79
      %p81 = scmp.ne.s32.totalorder %s73, %s76
      %p82 = scmp.eq.s32.totalorder %s16, 0
      %p83 = por %p81, %p82
      %p84 = scmp.ne.s32.totalorder %s73, %s76
      %p85 = scmp.eq.s32.totalorder %s21, 3
      %p86 = por %p84, %p85
      %p87 = scmp.ne.s32.totalorder %s76, %s77
      %p88 = scmp.eq.s32.totalorder %s21, 0
      %p89 = por %p87, %p88
      %p90 = scmp.ne.s32.totalorder %s76, %s77
      %p91 = scmp.eq.s32.totalorder %s22, 3
      %p92 = por %p90, %p91
      %p94 = scmp.ne.s32.totalorder %s77, %s93
      %p95 = scmp.eq.s32.totalorder %s22, 0
      %p96 = por %p94, %p95
      %s97 = ssub.s32 %s16, %s23
      %p98 = scmp.eq.s32.totalorder %s97, 0
      %s100 = sadd.s32 %s99, 1
      %s101 = scalar_select %p98, %s99, %s100
      %p104 = pneg %p98
      %p105 = scmp.eq.s32.totalorder %s16, 3
      %p106 = por %p104, %p105
      %p107 = scmp.ne.s32.totalorder %s99, %s102
      %p108 = scmp.eq.s32.totalorder %s16, 0
      %p109 = por %p107, %p108
      %p110 = scmp.ne.s32.totalorder %s99, %s102
      %p111 = scmp.eq.s32.totalorder %s21, 3
      %p112 = por %p110, %p111
      %p113 = scmp.ne.s32.totalorder %s102, %s103
      %p114 = scmp.eq.s32.totalorder %s21, 0
      %p115 = por %p113, %p114
      %p116 = scmp.ne.s32.totalorder %s102, %s103
      %p117 = scmp.eq.s32.totalorder %s22, 3
      %p118 = por %p116, %p117
      %p120 = scmp.ne.s32.totalorder %s103, %s119
      %p121 = scmp.eq.s32.totalorder %s22, 0
      %p122 = por %p120, %p121
      %p123 = scmp.le.s32.totalorder 1, %s16
      %p124 = scmp.lt.s32.totalorder %s16, 5
      %p125 = pnand %p123, %p124
      %p126 = pneg %p125
      // Predicated region
      $region9: #{tpu_custom_call.1} parent=5 // pred_check
        _
      $region10: #{tpu_custom_call.1} parent=5 // pred_check_branch
        %128 = sbr.rel (%p125) target = $region12
      $region11: #{tpu_custom_call.1} parent=5 // pred_region
        %s129 = ssub.s32 %s16, 1
        // Predicated region
        $region13: #{tpu_custom_call.1} parent=11 // pred_check
          %p130 = pneg %p63
        $region14: #{tpu_custom_call.1} parent=11 // pred_check_branch
          %132 = sbr.rel (%p130) target = $region16
        $region15: #{tpu_custom_call.1} parent=11 // pred_region
          _
        $region16: #{tpu_custom_call.1} parent=11 // pred_fallthru
          _
      $region12: #{tpu_custom_call.1} parent=5 // pred_fallthru
        _
      %p133 = scmp.lt.s32.totalorder %s16, 4
      // Predicated region
      $region17: #{tpu_custom_call.1} parent=5 // pred_check
        %p134 = pneg %p133
      $region18: #{tpu_custom_call.1} parent=5 // pred_check_branch
        %136 = sbr.rel (%p134) target = $region20
      $region19: #{tpu_custom_call.1} parent=5 // pred_region
        // Predicated region
        $region21: #{tpu_custom_call.1} parent=19 // pred_check
          %p137 = pneg %p36
        $region22: #{tpu_custom_call.1} parent=19 // pred_check_branch
          %139 = sbr.rel (%p137) target = $region24
        $region23: #{tpu_custom_call.1} parent=19 // pred_region
          %s140 = smul.u32 16, %s16
          %p141 = scmp.lt.s32.totalorder %s140, 63
          %s142 = scalar_select %p141, %s140, 63
          %s143 = smul.addr %s142, 8
          %s144 = scalar_lea.vmem %s0, %s143
          %s145 = smul.u32 16, %s16
        $region24: #{tpu_custom_call.1} parent=19 // pred_fallthru
          _
      $region20: #{tpu_custom_call.1} parent=5 // pred_fallthru
        _
      %p146 = scmp.le.s32.totalorder 1, %s16
      %p147 = scmp.lt.s32.totalorder %s16, 5
      %p148 = pnand %p146, %p147
      %p149 = pneg %p148
      // Predicated region
      $region25: #{tpu_custom_call.1} parent=5 // pred_check
        _
      $region26: #{tpu_custom_call.1} parent=5 // pred_check_branch
        %151 = sbr.rel (%p148) target = $region28
      $region27: #{tpu_custom_call.1} parent=5 // pred_region
        %s152 = ssub.s32 %s16, 1
        %s153 = smul.u32 16, %s21
        %p154 = scmp.lt.s32.totalorder %s153, 63
        %s155 = scalar_select %p154, %s153, 63
        %s156 = smul.addr %s155, 8
        %s157 = scalar_lea.vmem %s0, %s156
        %p158 = pneg %p42
        %p159 = pneg %p39
        %p160 = pneg %p63
        %p161 = pneg %p60
        %p162 = pneg %p89
        %p163 = pneg %p86
        %s164 = sand.u32 %s76, 1
        %s165 = scalar_lea.sflag [#allocation3], %s164
        %s166 = sand.u32 %s76, 1
        %s167 = scalar_lea.vmem [#allocation2], %s166
        %p168 = pneg %p115
        %p169 = pneg %p112
        %s170 = sand.u32 %s102, 1
        %s171 = scalar_lea.sflag [#allocation5], %s170
        %s172 = sand.u32 %s102, 1
        %s173 = scalar_lea.vmem [#allocation4], %s172
        %s174 = smul.u32 16, %s21
        %p175 = scmp.lt.s32.totalorder %s174, 63
        %s176 = scalar_select %p175, %s174, 63
        %s177 = smul.addr %s176, 8
        %s178 = scalar_lea.vmem %s0, %s177
        %s179 = smul.u32 16, %s21
        %v180 = vld [vmem:[%s178] sm:$0xff]
        %v181 = vld [vmem:[%s178 + $0x8] sm:$0xff]
        %v182 = vld [vmem:[%s178 + $0x10] sm:$0xff]
        %v183 = vld [vmem:[%s178 + $0x18] sm:$0xff]
        %v184 = vld [vmem:[%s178 + $0x20] sm:$0xff]
        %v185 = vld [vmem:[%s178 + $0x28] sm:$0xff]
        %v186 = vld [vmem:[%s178 + $0x30] sm:$0xff]
        %v187 = vld [vmem:[%s178 + $0x38] sm:$0xff]
        %v188 = vld [vmem:[%s178 + $0x40] sm:$0xff]
        %v189 = vld [vmem:[%s178 + $0x48] sm:$0xff]
        %v190 = vld [vmem:[%s178 + $0x50] sm:$0xff]
        %v191 = vld [vmem:[%s178 + $0x58] sm:$0xff]
        %v192 = vld [vmem:[%s178 + $0x60] sm:$0xff]
        %v193 = vld [vmem:[%s178 + $0x68] sm:$0xff]
        %v194 = vld [vmem:[%s178 + $0x70] sm:$0xff]
        %v195 = vld [vmem:[%s178 + $0x78] sm:$0xff]
        %v196 = vld [vmem:[%s1] sm:$0xff]
        %v197 = vld [vmem:[%s1 + $0x8] sm:$0xff]
        %v198 = vld [vmem:[%s1 + $0x10] sm:$0xff]
        %v199 = vld [vmem:[%s1 + $0x18] sm:$0xff]
        %v200 = vld [vmem:[%s1 + $0x20] sm:$0xff]
        %vm201 = vcmask 326656
        %v203 = vsel %vm201, %v180, 0
        %v206 = vsel %vm201, %v181, 0
        %v209 = vsel %vm201, %v182, 0
        %v212 = vsel %vm201, %v183, 0
        %v215 = vsel %vm201, %v184, 0
        %v218 = vsel %vm201, %v185, 0
        %v221 = vsel %vm201, %v186, 0
        %v224 = vsel %vm201, %v187, 0
        %v227 = vsel %vm201, %v188, 0
        %v230 = vsel %vm201, %v189, 0
        %v233 = vsel %vm201, %v190, 0
        %v236 = vsel %vm201, %v191, 0
        %v239 = vsel %vm201, %v192, 0
        %v242 = vsel %vm201, %v193, 0
        %v245 = vsel %vm201, %v194, 0
        %v248 = vsel %vm201, %v195, 0
        %250 = vmatprep.subr.mxu0 0.0
        %251 = vmatpush1.msra.mxu0 %v196
        %252 = vmatprep.subr.mxu0 0.0
        %253 = vmatpush1.msra.mxu0 %v197
        %254 = vmatprep.subr.mxu0 0.0
        %255 = vmatpush1.msra.mxu0 %v198
        %256 = vmatprep.subr.mxu0 0.0
        %257 = vmatpush1.msra.mxu0 %v199
        %258 = vmatprep.subr.mxu0 0.0
        %259 = vmatpush1.msra.mxu0 %v200
        %260 = vmatprep.subr.mxu0 0.0
        %261 = vmatpush1.msra.mxu0 0.0
        %262 = vmatprep.subr.mxu0 0.0
        %263 = vmatpush1.msra.mxu0 0.0
        %264 = vmatprep.subr.mxu0 0.0
        %265 = vmatpush1.msra.mxu0 0.0
        %266 = vmatprep.subr.mxu0 0.0
        %267 = vmatpush1.msra.mxu0 0.0
        %268 = vmatprep.subr.mxu0 0.0
        %269 = vmatpush1.msra.mxu0 0.0
        %270 = vmatprep.subr.mxu0 0.0
        %271 = vmatpush1.msra.mxu0 0.0
        %272 = vmatprep.subr.mxu0 0.0
        %273 = vmatpush1.msra.mxu0 0.0
        %274 = vmatprep.subr.mxu0 0.0
        %275 = vmatpush1.msra.mxu0 0.0
        %276 = vmatprep.subr.mxu0 0.0
        %277 = vmatpush1.msra.mxu0 0.0
        %278 = vmatprep.subr.mxu0 0.0
        %279 = vmatpush1.msra.mxu0 0.0
        %280 = vmatprep.subr.mxu0 0.0
        %281 = vmatpush1.msra.mxu0 0.0
        %282 = vmatprep.subr.mxu0 0.0
        %283 = vmatpush1.msra.mxu0 0.0
        %284 = vmatprep.subr.mxu0 0.0
        %285 = vmatpush1.msra.mxu0 0.0
        %286 = vmatprep.subr.mxu0 0.0
        %287 = vmatpush1.msra.mxu0 0.0
        %288 = vmatprep.subr.mxu0 0.0
        %289 = vmatpush1.msra.mxu0 0.0
        %290 = vmatprep.subr.mxu0 0.0
        %291 = vmatpush1.msra.mxu0 0.0
        %292 = vmatprep.subr.mxu0 0.0
        %293 = vmatpush1.msra.mxu0 0.0
        %294 = vmatprep.subr.mxu0 0.0
        %295 = vmatpush1.msra.mxu0 0.0
        %296 = vmatprep.subr.mxu0 0.0
        %297 = vmatpush1.msra.mxu0 0.0
        %298 = vmatprep.subr.mxu0 0.0
        %299 = vmatpush1.msra.mxu0 0.0
        %300 = vmatprep.subr.mxu0 0.0
        %301 = vmatpush1.msra.mxu0 0.0
        %302 = vmatprep.subr.mxu0 0.0
        %303 = vmatpush1.msra.mxu0 0.0
        %304 = vmatprep.subr.mxu0 0.0
        %305 = vmatpush1.msra.mxu0 0.0
        %306 = vmatprep.subr.mxu0 0.0
        %307 = vmatpush1.msra.mxu0 0.0
        %308 = vmatprep.subr.mxu0 0.0
        %309 = vmatpush1.msra.mxu0 0.0
        %310 = vmatprep.subr.mxu0 0.0
        %311 = vmatpush1.msra.mxu0 0.0
        %312 = vmatprep.subr.mxu0 0.0
        %313 = vmatpush1.msra.mxu0 0.0
        %314 = vmatprep.mubr.f32.mxu0 0.0
        %315 = vmatmul.mubr.f32.gmra.mrb[0].mxu0 %v203
        %v316 = vpop.f32.mrb[0].mxu0
        %v317 = vadd.f32 0.0, %v316
        %v318 = vpop.f32.mrb[0].mxu0
        %319 = vmatprep.mubr.f32.mxu0 0.0
        %320 = vmatmul.mubr.f32.gmra.mrb[0].mxu0 %v206
        %v321 = vpop.f32.mrb[0].mxu0
        %v322 = vadd.f32 0.0, %v321
        %v323 = vpop.f32.mrb[0].mxu0
        %324 = vmatprep.mubr.f32.mxu0 0.0
        %325 = vmatmul.mubr.f32.gmra.mrb[0].mxu0 %v209
        %v326 = vpop.f32.mrb[0].mxu0
        %v327 = vadd.f32 0.0, %v326
        %v328 = vpop.f32.mrb[0].mxu0
        %329 = vmatprep.mubr.f32.mxu0 0.0
        %330 = vmatmul.mubr.f32.gmra.mrb[0].mxu0 %v212
        %v331 = vpop.f32.mrb[0].mxu0
        %v332 = vadd.f32 0.0, %v331
        %v333 = vpop.f32.mrb[0].mxu0
        %334 = vmatprep.mubr.f32.mxu0 0.0
        %335 = vmatmul.mubr.f32.gmra.mrb[0].mxu0 %v215
        %v336 = vpop.f32.mrb[0].mxu0
        %v337 = vadd.f32 0.0, %v336
        %v338 = vpop.f32.mrb[0].mxu0
        %339 = vmatprep.mubr.f32.mxu0 0.0
        %340 = vmatmul.mubr.f32.gmra.mrb[0].mxu0 %v218
        %v341 = vpop.f32.mrb[0].mxu0
        %v342 = vadd.f32 0.0, %v341
        %v343 = vpop.f32.mrb[0].mxu0
        %344 = vmatprep.mubr.f32.mxu0 0.0
        %345 = vmatmul.mubr.f32.gmra.mrb[0].mxu0 %v221
        %v346 = vpop.f32.mrb[0].mxu0
        %v347 = vadd.f32 0.0, %v346
        %v348 = vpop.f32.mrb[0].mxu0
        %349 = vmatprep.mubr.f32.mxu0 0.0
        %350 = vmatmul.mubr.f32.gmra.mrb[0].mxu0 %v224
        %v351 = vpop.f32.mrb[0].mxu0
        %v352 = vadd.f32 0.0, %v351
        %v353 = vpop.f32.mrb[0].mxu0
        %354 = vmatprep.mubr.f32.mxu0 0.0
        %355 = vmatmul.mubr.f32.gmra.mrb[0].mxu0 %v227
        %v356 = vpop.f32.mrb[0].mxu0
        %v357 = vadd.f32 0.0, %v356
        %v358 = vpop.f32.mrb[0].mxu0
        %359 = vmatprep.mubr.f32.mxu0 0.0
        %360 = vmatmul.mubr.f32.gmra.mrb[0].mxu0 %v230
        %v361 = vpop.f32.mrb[0].mxu0
        %v362 = vadd.f32 0.0, %v361
        %v363 = vpop.f32.mrb[0].mxu0
        %364 = vmatprep.mubr.f32.mxu0 0.0
        %365 = vmatmul.mubr.f32.gmra.mrb[0].mxu0 %v233
        %v366 = vpop.f32.mrb[0].mxu0
        %v367 = vadd.f32 0.0, %v366
        %v368 = vpop.f32.mrb[0].mxu0
        %369 = vmatprep.mubr.f32.mxu0 0.0
        %370 = vmatmul.mubr.f32.gmra.mrb[0].mxu0 %v236
        %v371 = vpop.f32.mrb[0].mxu0
        %v372 = vadd.f32 0.0, %v371
        %v373 = vpop.f32.mrb[0].mxu0
        %374 = vmatprep.mubr.f32.mxu0 0.0
        %375 = vmatmul.mubr.f32.gmra.mrb[0].mxu0 %v239
        %v376 = vpop.f32.mrb[0].mxu0
        %v377 = vadd.f32 0.0, %v376
        %v378 = vpop.f32.mrb[0].mxu0
        %379 = vmatprep.mubr.f32.mxu0 0.0
        %380 = vmatmul.mubr.f32.gmra.mrb[0].mxu0 %v242
        %v381 = vpop.f32.mrb[0].mxu0
        %v382 = vadd.f32 0.0, %v381
        %v383 = vpop.f32.mrb[0].mxu0
        %384 = vmatprep.mubr.f32.mxu0 0.0
        %385 = vmatmul.mubr.f32.gmra.mrb[0].mxu0 %v245
        %v386 = vpop.f32.mrb[0].mxu0
        %v387 = vadd.f32 0.0, %v386
        %v388 = vpop.f32.mrb[0].mxu0
        %389 = vmatprep.mubr.f32.mxu0 0.0
        %390 = vmatmul.mubr.f32.gmra.mrb[0].mxu0 %v248
        %v391 = vpop.f32.mrb[0].mxu0
        %v392 = vadd.f32 0.0, %v391
        %v393 = vpop.f32.mrb[0].mxu0
        %394 = vdwg.mxu0
        %v395 = vadd.f32 %v317, %v322
        %v396 = vadd.f32 %v395, %v327
        %v397 = vadd.f32 %v396, %v332
        %v398 = vadd.f32 %v397, %v337
        %v399 = vadd.f32 %v398, %v342
        %v400 = vadd.f32 %v399, %v347
        %v401 = vadd.f32 %v400, %v352
        %v402 = vadd.f32 %v401, %v357
        %v403 = vadd.f32 %v402, %v362
        %v404 = vadd.f32 %v403, %v367
        %v405 = vadd.f32 %v404, %v372
        %v406 = vadd.f32 %v405, %v377
        %v407 = vadd.f32 %v406, %v382
        %v408 = vadd.f32 %v407, %v387
        %v409 = vadd.f32 %v408, %v392
        %v410 = vrot.slane %v409, 4
        %v411 = vadd.f32 %v409, %v410
        %v412 = vrot.slane %v411, 2
        %v413 = vadd.f32 %v411, %v412
        %v414 = vrot.slane %v413, 1
        %v415 = vadd.f32 %v413, %v414
        %416 = vst [vmem:[%s167] sm:$0x1] %v415
        %v417 = vmul.f32 %v317, %v317
        %v418 = vmul.f32 %v322, %v322
        %v419 = vmul.f32 %v327, %v327
        %v420 = vmul.f32 %v332, %v332
        %v421 = vmul.f32 %v337, %v337
        %v422 = vmul.f32 %v342, %v342
        %v423 = vmul.f32 %v347, %v347
        %v424 = vmul.f32 %v352, %v352
        %v425 = vmul.f32 %v357, %v357
        %v426 = vmul.f32 %v362, %v362
        %v427 = vmul.f32 %v367, %v367
        %v428 = vmul.f32 %v372, %v372
        %v429 = vmul.f32 %v377, %v377
        %v430 = vmul.f32 %v382, %v382
        %v431 = vmul.f32 %v387, %v387
        %v432 = vmul.f32 %v392, %v392
        %v433 = vadd.f32 %v417, %v418
        %v434 = vadd.f32 %v433, %v419
        %v435 = vadd.f32 %v434, %v420
        %v436 = vadd.f32 %v435, %v421
        %v437 = vadd.f32 %v436, %v422
        %v438 = vadd.f32 %v437, %v423
        %v439 = vadd.f32 %v438, %v424
        %v440 = vadd.f32 %v439, %v425
        %v441 = vadd.f32 %v440, %v426
        %v442 = vadd.f32 %v441, %v427
        %v443 = vadd.f32 %v442, %v428
        %v444 = vadd.f32 %v443, %v429
        %v445 = vadd.f32 %v444, %v430
        %v446 = vadd.f32 %v445, %v431
        %v447 = vadd.f32 %v446, %v432
        %v448 = vrot.slane %v447, 4
        %v449 = vadd.f32 %v447, %v448
        %v450 = vrot.slane %v449, 2
        %v451 = vadd.f32 %v449, %v450
        %v452 = vrot.slane %v451, 1
        %v453 = vadd.f32 %v451, %v452
        %454 = vst [vmem:[%s173] sm:$0x1] %v453
        %s455 = sand.u32 %s76, 1
        %s456 = scalar_lea.sflag [#allocation3], %s455
        %s457 = sand.u32 %s76, 1
        %s458 = scalar_lea.vmem [#allocation2], %s457
        %s459 = sand.u32 %s102, 1
        %s460 = scalar_lea.sflag [#allocation5], %s459
        %s461 = sand.u32 %s102, 1
        %s462 = scalar_lea.vmem [#allocation4], %s461
        // Predicated region
        $region29: #{tpu_custom_call.1} parent=27 // pred_check
          %p463 = pneg %p86
        $region30: #{tpu_custom_call.1} parent=27 // pred_check_branch
          %465 = sbr.rel (%p463) target = $region32
        $region31: #{tpu_custom_call.1} parent=27 // pred_region
          %s467 = ssub.s32 16, 16
          %468 = vsyncadd %s456, %s467
          %s469 = smul.addr %s21, 16
          %s470 = scalar_lea.hbm %s2, %s469
          %s472 = sshll.u32 %s458, 4
          %s473 = int_to_ptr.vmem [resolvable:$true] %s472
          %475 = dma.vmem_to_hbm [thread:$0]  %s473, 16, %s470, %s456
        $region32: #{tpu_custom_call.1} parent=27 // pred_fallthru
          _
        // Predicated region
        $region33: #{tpu_custom_call.1} parent=27 // pred_check
          %p476 = pneg %p112
        $region34: #{tpu_custom_call.1} parent=27 // pred_check_branch
          %478 = sbr.rel (%p476) target = $region36
        $region35: #{tpu_custom_call.1} parent=27 // pred_region
          %s480 = ssub.s32 16, 16
          %481 = vsyncadd %s460, %s480
          %s482 = smul.addr %s21, 16
          %s483 = scalar_lea.hbm %s3, %s482
          %s485 = sshll.u32 %s462, 4
          %s486 = int_to_ptr.vmem [resolvable:$true] %s485
          %488 = dma.vmem_to_hbm [thread:$0]  %s486, 16, %s483, %s460
        $region36: #{tpu_custom_call.1} parent=27 // pred_fallthru
          _
      $region28: #{tpu_custom_call.1} parent=5 // pred_fallthru
        _
      %p489 = scmp.le.s32.totalorder 2, %s16
      // Predicated region
      $region37: #{tpu_custom_call.1} parent=5 // pred_check
        %p490 = pneg %p489
      $region38: #{tpu_custom_call.1} parent=5 // pred_check_branch
        %492 = sbr.rel (%p490) target = $region40
      $region39: #{tpu_custom_call.1} parent=5 // pred_region
        %s493 = ssub.s32 %s16, 2
        // Predicated region
        $region41: #{tpu_custom_call.1} parent=39 // pred_check
          %p494 = pneg %p92
        $region42: #{tpu_custom_call.1} parent=39 // pred_check_branch
          %496 = sbr.rel (%p494) target = $region44
        $region43: #{tpu_custom_call.1} parent=39 // pred_region
          %s497 = sand.u32 %s77, 1
          %s498 = scalar_lea.sflag [#allocation3], %s497
          %s499 = sand.u32 %s77, 1
          %s500 = scalar_lea.vmem [#allocation2], %s499
          %501 = dma.done %s498, 16
        $region44: #{tpu_custom_call.1} parent=39 // pred_fallthru
          _
        // Predicated region
        $region45: #{tpu_custom_call.1} parent=39 // pred_check
          %p502 = pneg %p118
        $region46: #{tpu_custom_call.1} parent=39 // pred_check_branch
          %504 = sbr.rel (%p502) target = $region48
        $region47: #{tpu_custom_call.1} parent=39 // pred_region
          %s505 = sand.u32 %s103, 1
          %s506 = scalar_lea.sflag [#allocation5], %s505
          %s507 = sand.u32 %s103, 1
          %s508 = scalar_lea.vmem [#allocation4], %s507
          %509 = dma.done %s506, 16
        $region48: #{tpu_custom_call.1} parent=39 // pred_fallthru
          _
      $region40: #{tpu_custom_call.1} parent=5 // pred_fallthru
        _
    $region6: #{tpu_custom_call.1} parent=1 // loop_footer
      %s20 = sadd.s32 1, %s16
    $region7: #{tpu_custom_call.1} parent=1 // loop_footer_branch
      %15 = sbr.rel target = $region3
    $region8: #{tpu_custom_call.1} parent=1 // loop_exit
      _
    %510 = vsyncpa [#allocation3], 1
    %s511 = scalar_lea.sflag [#allocation3], 1
    %512 = vsyncpa %s511, 1
    %513 = vsyncpa [#allocation5], 1
    %s514 = scalar_lea.sflag [#allocation5], 1
    %515 = vsyncpa %s514, 1

</llo_original>
